<compile_context>
chip_gen: v5e
topology: v5e:2x2
jax: 0.10.0
libtpu: 0.0.40
codegen_flags: <defaults>
</compile_context>

<pallas_src>
import math

import jax
import jax.numpy as jnp
from jax import lax
from jax.experimental import pallas as pl
from jax.experimental.pallas import tpu as pltpu


# ----------------------------- kernel -------------------------------------- #

def _mlp_kernel(x_ref, w1_ref, b1_ref, w2_ref, b2_ref, o_ref, acc_ref):
    """Fused  y = GELU(x @ W1 + b1) @ W2 + b2  over one row-tile.

    Grid axis 0: row tiles (parallel).  Grid axis 1: hidden tiles (arbitrary,
    accumulated into acc_ref).
    """
    j = pl.program_id(1)

    @pl.when(j == 0)
    def _():
        acc_ref[...] = jnp.zeros_like(acc_ref)

    x = x_ref[...].astype(jnp.float32)

    # fc1 (this hidden tile) + bias
    h = jnp.dot(x, w1_ref[...].astype(jnp.float32),
                preferred_element_type=jnp.float32)
    h = h + b1_ref[...].astype(jnp.float32)

    # exact (erf-based) GELU -- matches torch.nn.GELU() default
    h = 0.5 * h * (1.0 + lax.erf(h * (1.0 / math.sqrt(2.0))))

    # fc2 partial product, accumulated across hidden tiles
    acc_ref[...] += jnp.dot(h, w2_ref[...].astype(jnp.float32),
                            preferred_element_type=jnp.float32)

    @pl.when(j == pl.num_programs(1) - 1)
    def _():
        o_ref[...] = (acc_ref[...] + b2_ref[...].astype(jnp.float32)
                      ).astype(o_ref.dtype)


# ----------------------------- wrapper -------------------------------------- #

def _round_up(a, b):
    return -(-a // b) * b


def mlp_forward(x, params, *, row_tile=512, hidden_tile=512):
    """x: (..., in_features).  Returns (..., out_features).

    params: fc1_weight (hidden, in), fc1_bias (hidden,),
            fc2_weight (out, hidden), fc2_bias (out,)   -- torch Linear layout.
    """
    orig_shape = x.shape
    in_features = orig_shape[-1]
    rows = int(math.prod(orig_shape[:-1]))
    x2 = x.reshape(rows, in_features)

    w1 = jnp.transpose(params["fc1_weight"])          # (in, hidden)
    w2 = jnp.transpose(params["fc2_weight"])          # (hidden, out)
    hidden = w1.shape[1]
    out_features = w2.shape[1]
    b1 = params["fc1_bias"].reshape(1, hidden)
    b2 = params["fc2_bias"].reshape(1, out_features)

    # Row tiling: no wrapper-side pad -- grid uses cdiv and Pallas masks the
    # partial last block (garbage rows only produce dropped output rows).
    tm = min(row_tile, _round_up(rows, 8))

    # Hidden tiling: only when it divides evenly (keeps the accumulator exact
    # with zero masking); otherwise keep the whole hidden dim resident.
    th = hidden
    if hidden > hidden_tile and hidden % hidden_tile == 0:
        th = hidden_tile

    grid = (pl.cdiv(rows, tm), hidden // th)

    out = pl.pallas_call(
        _mlp_kernel,
        out_shape=jax.ShapeDtypeStruct((rows, out_features), x.dtype),
        grid_spec=pltpu.PrefetchScalarGridSpec(
            num_scalar_prefetch=0,
            grid=grid,
            in_specs=[
                pl.BlockSpec((tm, in_features), lambda i, j: (i, 0)),   # x rows
                pl.BlockSpec((in_features, th), lambda i, j: (0, j)),   # W1 slice
                pl.BlockSpec((1, th), lambda i, j: (0, j)),             # b1 slice
                pl.BlockSpec((th, out_features), lambda i, j: (j, 0)),  # W2 slice
                pl.BlockSpec((1, out_features), lambda i, j: (0, 0)),   # b2
            ],
            out_specs=pl.BlockSpec((tm, out_features), lambda i, j: (i, 0)),
            scratch_shapes=[pltpu.VMEM((tm, out_features), jnp.float32)],
        ),
        compiler_params=pltpu.CompilerParams(
            dimension_semantics=("parallel", "arbitrary")),
    )(x2, w1, b1, w2, b2)

    return out.reshape(*orig_shape[:-1], out_features)


# ----------------------------- demo ----------------------------------------- #

if __name__ == "__main__":
    key = jax.random.PRNGKey(0)
    B, N, in_features = 2, 16, 128          # small, lane-dense demo shapes
    hidden_features = 256
    out_features = in_features              # Mlp default: out = in

    k1, k2, k3, k4, k5 = jax.random.split(key, 5)
    x = jax.random.normal(k1, (B, N, in_features), dtype=jnp.float32)

    # nn.Linear default-style init (uniform +/- 1/sqrt(fan_in))
    b1_bound = 1.0 / math.sqrt(in_features)
    b2_bound = 1.0 / math.sqrt(hidden_features)
    params = {
        "fc1_weight": jax.random.uniform(
            k2, (hidden_features, in_features), minval=-b1_bound, maxval=b1_bound,
            dtype=jnp.float32),
        "fc1_bias": jax.random.uniform(
            k3, (hidden_features,), minval=-b1_bound, maxval=b1_bound,
            dtype=jnp.float32),
        "fc2_weight": jax.random.uniform(
            k4, (out_features, hidden_features), minval=-b2_bound, maxval=b2_bound,
            dtype=jnp.float32),
        "fc2_bias": jax.random.uniform(
            k5, (out_features,), minval=-b2_bound, maxval=b2_bound,
            dtype=jnp.float32),
    }

    fwd = jax.jit(lambda xx: mlp_forward(xx, params))
    out = fwd(x)
    jax.block_until_ready(out)
    assert out.shape == (B, N, out_features), out.shape

    # pure-JAX reference (high precision) for a sanity check
    def ref_fn(xx):
        h = jnp.dot(xx, params["fc1_weight"].T,
                    precision=lax.Precision.HIGHEST) + params["fc1_bias"]
        h = 0.5 * h * (1.0 + lax.erf(h / math.sqrt(2.0)))
        return jnp.dot(h, params["fc2_weight"].T,
                       precision=lax.Precision.HIGHEST) + params["fc2_bias"]

    ref = ref_fn(x)
    assert jnp.allclose(out, ref, atol=5e-3, rtol=5e-3), \
        float(jnp.max(jnp.abs(out - ref)))

    print("KERNEL_OK")
</pallas_src>

<mosaic_0001>
module attributes {stable_mosaic.version = 11 : i64} {
  func.func @_mlp_kernel(%arg0: i32, %arg1: i32, %arg2: memref<32x128xf32, #tpu.memory_space<vmem>>, %arg3: memref<128x256xf32, #tpu.memory_space<vmem>>, %arg4: memref<1x256xf32, #tpu.memory_space<vmem>>, %arg5: memref<256x128xf32, #tpu.memory_space<vmem>>, %arg6: memref<1x128xf32, #tpu.memory_space<vmem>>, %arg7: memref<32x128xf32, #tpu.memory_space<vmem>>, %arg8: memref<32x128xf32, #tpu.memory_space<vmem>>) attributes {dimension_semantics = [#tpu.dimension_semantics<parallel>, #tpu.dimension_semantics<arbitrary>], iteration_bounds = array<i64: 1, 1>, scalar_prefetch = 0 : i64, scratch_operands = 1 : i64, tpu.core_type = #tpu.core_type<tc>, window_params = [{transform_indices = @transform_0, window_bounds = array<i64: 32, 128>}, {transform_indices = @transform_1, window_bounds = array<i64: 128, 256>}, {transform_indices = @transform_2, window_bounds = array<i64: 1, 256>}, {transform_indices = @transform_3, window_bounds = array<i64: 256, 128>}, {pipeline_mode = #tpu.pipeline_mode<synchronous>, transform_indices = @transform_4, window_bounds = array<i64: 1, 128>}, {transform_indices = @transform_5, window_bounds = array<i64: 32, 128>}]} {
    %c0_i32 = arith.constant 0 : i32
    %0 = arith.cmpi eq, %arg1, %c0_i32 : i32
    %1 = arith.extui %0 : i1 to i32
    %c0_i32_0 = arith.constant 0 : i32
    %2 = arith.cmpi ne, %1, %c0_i32_0 : i32
    scf.if %2 {
      %cst_18 = arith.constant 0.000000e+00 : f32
      %25 = vector.broadcast %cst_18 : f32 to vector<32x128xf32>
      %c0_19 = arith.constant 0 : index
      %c0_20 = arith.constant 0 : index
      %26 = vector.load %arg8[%c0_19, %c0_20] : memref<32x128xf32, #tpu.memory_space<vmem>>, vector<32x128xf32>
      tpu.vector_store %arg8[%c0_19, %c0_20], %25 {strides = array<i32>} : memref<32x128xf32, #tpu.memory_space<vmem>>, vector<32x128xf32>,
    } else {
    }
    %c0 = arith.constant 0 : index
    %c0_1 = arith.constant 0 : index
    %3 = vector.load %arg2[%c0, %c0_1] : memref<32x128xf32, #tpu.memory_space<vmem>>, vector<32x128xf32>
    %c0_2 = arith.constant 0 : index
    %c0_3 = arith.constant 0 : index
    %4 = vector.load %arg3[%c0_2, %c0_3] : memref<128x256xf32, #tpu.memory_space<vmem>>, vector<128x256xf32>
    %cst = arith.constant dense<0.000000e+00> : vector<32x256xf32>
    %5 = tpu.matmul %3, %4, %cst {dimension_numbers = #tpu.dot_dimension_numbers<[1], [0], [0], [1], [0, 0, 1, 1], [], []>} : vector<32x128xf32>, vector<128x256xf32>, vector<32x256xf32> -> vector<32x256xf32>
    %c0_4 = arith.constant 0 : index
    %c0_5 = arith.constant 0 : index
    %6 = vector.load %arg4[%c0_4, %c0_5] : memref<1x256xf32, #tpu.memory_space<vmem>>, vector<1x256xf32>
    %7 = vector.broadcast %6 : vector<1x256xf32> to vector<32x256xf32>
    %8 = arith.addf %5, %7 : vector<32x256xf32>
    %cst_6 = arith.constant 5.000000e-01 : f32
    %9 = vector.broadcast %cst_6 : f32 to vector<32x256xf32>
    %10 = arith.mulf %9, %8 : vector<32x256xf32>
    %cst_7 = arith.constant 0.707106769 : f32
    %11 = vector.broadcast %cst_7 : f32 to vector<32x256xf32>
    %12 = arith.mulf %8, %11 : vector<32x256xf32>
    %13 = math.erf %12 : vector<32x256xf32>
    %cst_8 = arith.constant 1.000000e+00 : f32
    %14 = vector.broadcast %cst_8 : f32 to vector<32x256xf32>
    %15 = arith.addf %14, %13 : vector<32x256xf32>
    %16 = arith.mulf %10, %15 : vector<32x256xf32>
    %c0_9 = arith.constant 0 : index
    %c0_10 = arith.constant 0 : index
    %17 = vector.load %arg8[%c0_9, %c0_10] : memref<32x128xf32, #tpu.memory_space<vmem>>, vector<32x128xf32>
    %c0_11 = arith.constant 0 : index
    %c0_12 = arith.constant 0 : index
    %18 = vector.load %arg5[%c0_11, %c0_12] : memref<256x128xf32, #tpu.memory_space<vmem>>, vector<256x128xf32>
    %cst_13 = arith.constant dense<0.000000e+00> : vector<32x128xf32>
    %19 = tpu.matmul %16, %18, %cst_13 {dimension_numbers = #tpu.dot_dimension_numbers<[1], [0], [0], [1], [0, 0, 1, 1], [], []>} : vector<32x256xf32>, vector<256x128xf32>, vector<32x128xf32> -> vector<32x128xf32>
    %20 = arith.addf %17, %19 : vector<32x128xf32>
    %c0_14 = arith.constant 0 : index
    %c0_15 = arith.constant 0 : index
    %21 = vector.load %arg8[%c0_14, %c0_15] : memref<32x128xf32, #tpu.memory_space<vmem>>, vector<32x128xf32>
    tpu.vector_store %arg8[%c0_14, %c0_15], %20 {strides = array<i32>} : memref<32x128xf32, #tpu.memory_space<vmem>>, vector<32x128xf32>,
    %c0_i32_16 = arith.constant 0 : i32
    %22 = arith.cmpi eq, %arg1, %c0_i32_16 : i32
    %23 = arith.extui %22 : i1 to i32
    %c0_i32_17 = arith.constant 0 : i32
    %24 = arith.cmpi ne, %23, %c0_i32_17 : i32
    scf.if %24 {
      %c0_18 = arith.constant 0 : index
      %c0_19 = arith.constant 0 : index
      %25 = vector.load %arg8[%c0_18, %c0_19] : memref<32x128xf32, #tpu.memory_space<vmem>>, vector<32x128xf32>
      %c0_20 = arith.constant 0 : index
      %c0_21 = arith.constant 0 : index
      %26 = vector.load %arg6[%c0_20, %c0_21] : memref<1x128xf32, #tpu.memory_space<vmem>>, vector<1x128xf32>
      %27 = vector.broadcast %26 : vector<1x128xf32> to vector<32x128xf32>
      %28 = arith.addf %25, %27 : vector<32x128xf32>
      %c0_22 = arith.constant 0 : index
      %c0_23 = arith.constant 0 : index
      %29 = vector.load %arg7[%c0_22, %c0_23] : memref<32x128xf32, #tpu.memory_space<vmem>>, vector<32x128xf32>
      tpu.vector_store %arg7[%c0_22, %c0_23], %28 {strides = array<i32>} : memref<32x128xf32, #tpu.memory_space<vmem>>, vector<32x128xf32>,
    } else {
    }
    return
  }
  func.func @transform_0(%arg0: i32, %arg1: i32) -> (i32, i32) {
    %c0_i32 = arith.constant 0 : i32
    %c0_i32_0 = arith.constant 0 : i32
    return %arg0, %c0_i32 : i32, i32
  }
  func.func @transform_1(%arg0: i32, %arg1: i32) -> (i32, i32) {
    %c0_i32 = arith.constant 0 : i32
    %c0_i32_0 = arith.constant 0 : i32
    return %c0_i32, %arg1 : i32, i32
  }
  func.func @transform_2(%arg0: i32, %arg1: i32) -> (i32, i32) {
    %c0_i32 = arith.constant 0 : i32
    %c0_i32_0 = arith.constant 0 : i32
    return %c0_i32, %arg1 : i32, i32
  }
  func.func @transform_3(%arg0: i32, %arg1: i32) -> (i32, i32) {
    %c0_i32 = arith.constant 0 : i32
    %c0_i32_0 = arith.constant 0 : i32
    return %arg1, %c0_i32 : i32, i32
  }
  func.func @transform_4(%arg0: i32, %arg1: i32) -> (i32, i32) {
    %c0_i32 = arith.constant 0 : i32
    %c0_i32_0 = arith.constant 0 : i32
    %c0_i32_1 = arith.constant 0 : i32
    return %c0_i32, %c0_i32_0 : i32, i32
  }
  func.func @transform_5(%arg0: i32, %arg1: i32) -> (i32, i32) {
    %c0_i32 = arith.constant 0 : i32
    %c0_i32_0 = arith.constant 0 : i32
    return %arg0, %c0_i32 : i32, i32
  }
}

</mosaic_0001>

<llo_original>
// kernel: _lambda_.1
$region0: #{_lambda_.1}
  #allocation0 [shape = 'u32[]', space=smem, size = 0x4, offset = 0x4, fixed_abs, tag = 'smem constant byte address 0x4 - core index']
  #allocation1 [shape = 'u32[72,128]{1,0:T(1,128)}', space=vmem, size = 0x9000, scoped, tag = 'internal scratch']
  #allocation2 [shape = 'f32[32,128]{1,0:T(8,128)}', space=vmem, size = 0x4000, scoped, tag = 'scratch operand']
  %s0 = inlined_call_operand.hbm [shape: f32[32,128], index: 0, kind: input, shape index: {}]
  %s1 = inlined_call_operand.hbm [shape: f32[128,256], index: 1, kind: input, shape index: {}]
  %s2 = inlined_call_operand.vmem [shape: f32[1,256], index: 2, kind: input, shape index: {}]
  %s3 = inlined_call_operand.hbm [shape: f32[256,128], index: 3, kind: input, shape index: {}]
  %s4 = inlined_call_operand.hbm [shape: f32[1,128], index: 4, kind: input, shape index: {}]
  %s5 = inlined_call_operand.hbm [shape: f32[32,128], index: 5, kind: output, shape index: {}]
  %s6 = sld [smem:[#allocation0]]
  $region54: #{_lambda_.1} parent=0
    _
  %s8 = ssub.s32 1, %s6
  %s9 = scalar_select 0, %s8, %s6
  $region1: #{_lambda_.1} parent=0
    #allocation3 [shape = 'u8[16384]{0}', space=vmem, size = 0x4000, scoped, tag = 'input window, operand 0, single buffered']
    #allocation4 [shape = 's32[1]{0}', space=sflag, size = 0x4, scoped, tag = 'scoped memory for _lambda_.1']
    #allocation5 [shape = 's32[1]{0}', space=sflag, size = 0x4, scoped, tag = 'scoped memory for _lambda_.1']
    #allocation6 [shape = 'u8[131072]{0}', space=vmem, size = 0x20000, scoped, tag = 'input window, operand 1, single buffered']
    #allocation7 [shape = 's32[1]{0}', space=sflag, size = 0x4, scoped, tag = 'scoped memory for _lambda_.1']
    #allocation8 [shape = 'u8[131072]{0}', space=vmem, size = 0x20000, scoped, tag = 'input window, operand 3, single buffered']
    #allocation9 [shape = 'u8[512]{0}', space=vmem, size = 0x400, scoped, tag = 'input window, operand 4, single buffered']
    #allocation10 [shape = 's32[1]{0}', space=sflag, size = 0x4, scoped, tag = 'scoped memory for _lambda_.1']
    #allocation11 [shape = 'u8[16384]{0}', space=vmem, size = 0x4000, scoped, tag = 'output window, operand 0, single buffered']
    %10 = vsyncpa [#allocation4], 0
    %11 = vsyncpa [#allocation7], 0
    %12 = vsyncpa [#allocation10], 0
    %13 = vsyncpa [#allocation5], 0
    // Predicated region
    $region2: #{_lambda_.1} parent=1 // pred_check
      _
    $region3: #{_lambda_.1} parent=1 // pred_check_branch
      %15 = sbr.rel (0) target = $region5
    $region4: #{_lambda_.1} parent=1 // pred_region
      %17 = vsyncadd [#allocation4], 0
      %s18 = sshll.u32 %s0, 4
      %s19 = int_to_ptr.hbm [resolvable:$true] %s18
      %s20 = sshll.u32 [#allocation3], 4
      %s21 = int_to_ptr.vmem [resolvable:$true] %s20
      %26 = dma.hbm_to_vmem [thread:$0]  %s19, 512, %s21, [#allocation4], 128, 128, 8
    $region5: #{_lambda_.1} parent=1 // pred_fallthru
      _
    // Predicated region
    $region6: #{_lambda_.1} parent=1 // pred_check
      _
    $region7: #{_lambda_.1} parent=1 // pred_check_branch
      %28 = sbr.rel (0) target = $region9
    $region8: #{_lambda_.1} parent=1 // pred_region
      %30 = vsyncadd [#allocation7], 0
      %s31 = sshll.u32 %s1, 4
      %s32 = int_to_ptr.hbm [resolvable:$true] %s31
      %s33 = sshll.u32 [#allocation6], 4
      %s34 = int_to_ptr.vmem [resolvable:$true] %s33
      %39 = dma.hbm_to_vmem [thread:$0]  %s32, 4096, %s34, [#allocation7], 256, 256, 16
    $region9: #{_lambda_.1} parent=1 // pred_fallthru
      _
    // Predicated region
    $region10: #{_lambda_.1} parent=1 // pred_check
      _
    $region11: #{_lambda_.1} parent=1 // pred_check_branch
      %41 = sbr.rel (0) target = $region13
    $region12: #{_lambda_.1} parent=1 // pred_region
      _
    $region13: #{_lambda_.1} parent=1 // pred_fallthru
      _
    // Predicated region
    $region14: #{_lambda_.1} parent=1 // pred_check
      _
    $region15: #{_lambda_.1} parent=1 // pred_check_branch
      %43 = sbr.rel (0) target = $region17
    $region16: #{_lambda_.1} parent=1 // pred_region
      %45 = vsyncadd [#allocation7], 0
      %s46 = sshll.u32 %s3, 4
      %s47 = int_to_ptr.hbm [resolvable:$true] %s46
      %s48 = sshll.u32 [#allocation8], 4
      %s49 = int_to_ptr.vmem [resolvable:$true] %s48
      %54 = dma.hbm_to_vmem [thread:$0]  %s47, 4096, %s49, [#allocation7], 128, 128, 8
    $region17: #{_lambda_.1} parent=1 // pred_fallthru
      _
    // Predicated region
    $region18: #{_lambda_.1} parent=1 // pred_check
      _
    $region19: #{_lambda_.1} parent=1 // pred_check_branch
      %56 = sbr.rel (0) target = $region21
    $region20: #{_lambda_.1} parent=1 // pred_region
      %58 = vsyncadd [#allocation10], 0
      %s60 = sshll.u32 %s4, 4
      %s61 = int_to_ptr.hbm [resolvable:$true] %s60
      %s62 = sshll.u32 [#allocation9], 4
      %s63 = int_to_ptr.vmem [resolvable:$true] %s62
      %65 = dma.hbm_to_vmem [thread:$0]  %s61, 16, %s63, [#allocation10]
    $region21: #{_lambda_.1} parent=1 // pred_fallthru
      _
    // Predicated region
    $region22: #{_lambda_.1} parent=1 // pred_check
      _
    $region23: #{_lambda_.1} parent=1 // pred_check_branch
      %67 = sbr.rel (0) target = $region25
    $region24: #{_lambda_.1} parent=1 // pred_region
      %69 = dma.done [#allocation4], 512
    $region25: #{_lambda_.1} parent=1 // pred_fallthru
      _
    // Predicated region
    $region26: #{_lambda_.1} parent=1 // pred_check
      _
    $region27: #{_lambda_.1} parent=1 // pred_check_branch
      %71 = sbr.rel (0) target = $region29
    $region28: #{_lambda_.1} parent=1 // pred_region
      %73 = dma.done [#allocation7], 4096
    $region29: #{_lambda_.1} parent=1 // pred_fallthru
      _
    // Predicated region
    $region30: #{_lambda_.1} parent=1 // pred_check
      _
    $region31: #{_lambda_.1} parent=1 // pred_check_branch
      %75 = sbr.rel (0) target = $region33
    $region32: #{_lambda_.1} parent=1 // pred_region
      %77 = dma.done [#allocation7], 4096
    $region33: #{_lambda_.1} parent=1 // pred_fallthru
      _
    // Predicated region
    $region34: #{_lambda_.1} parent=1 // pred_check
      _
    $region35: #{_lambda_.1} parent=1 // pred_check_branch
      %79 = sbr.rel (0) target = $region37
    $region36: #{_lambda_.1} parent=1 // pred_region
      %81 = dma.done [#allocation10], 16
    $region37: #{_lambda_.1} parent=1 // pred_fallthru
      _
    %p82 = scmp.eq.s32.totalorder 0, 0
    // Predicated region
    $region38: #{_lambda_.1} parent=1 // pred_check
      %p83 = pneg %p82
    $region39: #{_lambda_.1} parent=1 // pred_check_branch
      %85 = sbr.rel (%p83) target = $region41
    $region40: #{_lambda_.1} parent=1 // pred_region
      %86 = vst [vmem:[#allocation2] sm:$0xff] 0.0
      %87 = vst [vmem:[#allocation2 + $0x8] sm:$0xff] 0.0
      %88 = vst [vmem:[#allocation2 + $0x10] sm:$0xff] 0.0
      %89 = vst [vmem:[#allocation2 + $0x18] sm:$0xff] 0.0
    $region41: #{_lambda_.1} parent=1 // pred_fallthru
      _
    %v90 = vld [vmem:[#allocation3] sm:$0xff]
    %v91 = vld [vmem:[#allocation3 + $0x8] sm:$0xff]
    %v92 = vld [vmem:[#allocation3 + $0x10] sm:$0xff]
    %v93 = vld [vmem:[#allocation3 + $0x18] sm:$0xff]
    %v94 = vld [vmem:[#allocation6] sm:$0xff]
    %v95 = vld [vmem:[#allocation6 + $0x8] sm:$0xff]
    %v96 = vld [vmem:[#allocation6 + $0x10] sm:$0xff]
    %v97 = vld [vmem:[#allocation6 + $0x18] sm:$0xff]
    %v98 = vld [vmem:[#allocation6 + $0x20] sm:$0xff]
    %v99 = vld [vmem:[#allocation6 + $0x28] sm:$0xff]
    %v100 = vld [vmem:[#allocation6 + $0x30] sm:$0xff]
    %v101 = vld [vmem:[#allocation6 + $0x38] sm:$0xff]
    %v102 = vld [vmem:[#allocation6 + $0x40] sm:$0xff]
    %v103 = vld [vmem:[#allocation6 + $0x48] sm:$0xff]
    %v104 = vld [vmem:[#allocation6 + $0x50] sm:$0xff]
    %v105 = vld [vmem:[#allocation6 + $0x58] sm:$0xff]
    %v106 = vld [vmem:[#allocation6 + $0x60] sm:$0xff]
    %v107 = vld [vmem:[#allocation6 + $0x68] sm:$0xff]
    %v108 = vld [vmem:[#allocation6 + $0x70] sm:$0xff]
    %v109 = vld [vmem:[#allocation6 + $0x78] sm:$0xff]
    %v110 = vld [vmem:[#allocation6 + $0x80] sm:$0xff]
    %v111 = vld [vmem:[#allocation6 + $0x88] sm:$0xff]
    %v112 = vld [vmem:[#allocation6 + $0x90] sm:$0xff]
    %v113 = vld [vmem:[#allocation6 + $0x98] sm:$0xff]
    %v114 = vld [vmem:[#allocation6 + $0xa0] sm:$0xff]
    %v115 = vld [vmem:[#allocation6 + $0xa8] sm:$0xff]
    %v116 = vld [vmem:[#allocation6 + $0xb0] sm:$0xff]
    %v117 = vld [vmem:[#allocation6 + $0xb8] sm:$0xff]
    %v118 = vld [vmem:[#allocation6 + $0xc0] sm:$0xff]
    %v119 = vld [vmem:[#allocation6 + $0xc8] sm:$0xff]
    %v120 = vld [vmem:[#allocation6 + $0xd0] sm:$0xff]
    %v121 = vld [vmem:[#allocation6 + $0xd8] sm:$0xff]
    %v122 = vld [vmem:[#allocation6 + $0xe0] sm:$0xff]
    %v123 = vld [vmem:[#allocation6 + $0xe8] sm:$0xff]
    %v124 = vld [vmem:[#allocation6 + $0xf0] sm:$0xff]
    %v125 = vld [vmem:[#allocation6 + $0xf8] sm:$0xff]
    %v126 = vld [vmem:[%s2] sm:$0x3]
    %v128 = vperm.slane %v126, 0
    %v129 = vperm.slane %v126, 1
    %132 = vmatpush.msra.mxu0 %v124
    %133 = vmatpush.msra.mxu0 %v122
    %134 = vmatpush.msra.mxu0 %v120
    %135 = vmatpush.msra.mxu0 %v118
    %136 = vmatpush.msra.mxu0 %v116
    %137 = vmatpush.msra.mxu0 %v114
    %138 = vmatpush.msra.mxu0 %v112
    %139 = vmatpush.msra.mxu0 %v110
    %140 = vmatpush.msra.mxu0 %v108
    %141 = vmatpush.msra.mxu0 %v106
    %142 = vmatpush.msra.mxu0 %v104
    %143 = vmatpush.msra.mxu0 %v102
    %144 = vmatpush.msra.mxu0 %v100
    %145 = vmatpush.msra.mxu0 %v98
    %146 = vmatpush.msra.mxu0 %v96
    %147 = vmatpush.msra.mxu0 %v94
    %148 = vmatmul.f32.gmra.mxu0 %v90
    %v149 = vpop.f32.mrf.mxu0
    %v150 = vadd.f32 %v128, %v149
    %151 = vmatmul.f32.gmra.mxu0 %v91
    %v152 = vpop.f32.mrf.mxu0
    %v153 = vadd.f32 %v128, %v152
    %154 = vmatmul.f32.gmra.mxu0 %v92
    %v155 = vpop.f32.mrf.mxu0
    %v156 = vadd.f32 %v128, %v155
    %157 = vmatmul.f32.gmra.mxu0 %v93
    %v158 = vpop.f32.mrf.mxu0
    %v159 = vadd.f32 %v128, %v158
    %160 = vdwg.mxu0
    %161 = vmatpush.msra.mxu0 %v125
    %162 = vmatpush.msra.mxu0 %v123
    %163 = vmatpush.msra.mxu0 %v121
    %164 = vmatpush.msra.mxu0 %v119
    %165 = vmatpush.msra.mxu0 %v117
    %166 = vmatpush.msra.mxu0 %v115
    %167 = vmatpush.msra.mxu0 %v113
    %168 = vmatpush.msra.mxu0 %v111
    %169 = vmatpush.msra.mxu0 %v109
    %170 = vmatpush.msra.mxu0 %v107
    %171 = vmatpush.msra.mxu0 %v105
    %172 = vmatpush.msra.mxu0 %v103
    %173 = vmatpush.msra.mxu0 %v101
    %174 = vmatpush.msra.mxu0 %v99
    %175 = vmatpush.msra.mxu0 %v97
    %176 = vmatpush.msra.mxu0 %v95
    %177 = vmatmul.f32.gmra.mxu0 %v90
    %v178 = vpop.f32.mrf.mxu0
    %v179 = vadd.f32 %v129, %v178
    %180 = vmatmul.f32.gmra.mxu0 %v91
    %v181 = vpop.f32.mrf.mxu0
    %v182 = vadd.f32 %v129, %v181
    %183 = vmatmul.f32.gmra.mxu0 %v92
    %v184 = vpop.f32.mrf.mxu0
    %v185 = vadd.f32 %v129, %v184
    %186 = vmatmul.f32.gmra.mxu0 %v93
    %v187 = vpop.f32.mrf.mxu0
    %v188 = vadd.f32 %v129, %v187
    %189 = vdwg.mxu0
    %v190 = vmul.f32 %v150, 0.5
    %v191 = vmul.f32 %v179, 0.5
    %v192 = vmul.f32 %v153, 0.5
    %v193 = vmul.f32 %v182, 0.5
    %v194 = vmul.f32 %v156, 0.5
    %v195 = vmul.f32 %v185, 0.5
    %v196 = vmul.f32 %v159, 0.5
    %v197 = vmul.f32 %v188, 0.5
    %v198 = vmul.f32 %v150, 0.70710677
    %v199 = vmul.f32 %v179, 0.70710677
    %v200 = vmul.f32 %v153, 0.70710677
    %v201 = vmul.f32 %v182, 0.70710677
    %v202 = vmul.f32 %v156, 0.70710677
    %v203 = vmul.f32 %v185, 0.70710677
    %v204 = vmul.f32 %v159, 0.70710677
    %v205 = vmul.f32 %v188, 0.70710677
    %v206 = vmul.f32 %v198, %v198
    %v207 = vmin.f32 16.0, %v206
    %v208 = vmul.f32 %v207, 2.1237322e-06
    %v209 = vadd.f32 %v208, 0.00028619796
    %v210 = vmul.f32 %v207, %v209
    %v211 = vadd.f32 %v210, 0.0036580483
    %v212 = vmul.f32 %v207, %v211
    %v213 = vadd.f32 %v212, 0.05243302
    %v214 = vmul.f32 %v207, %v213
    %v215 = vadd.f32 %v214, 0.18741608
    %v216 = vmul.f32 %v207, %v215
    %v217 = vadd.f32 %v216, 1.1283791
    %v218 = vmul.f32 %v198, %v217
    %v219 = vmul.f32 %v207, 3.8918573e-05
    %v220 = vadd.f32 %v219, 0.001143296
    %v221 = vmul.f32 %v207, %v220
    %v222 = vadd.f32 %v221, 0.014752088
    %v223 = vmul.f32 %v207, %v222
    %v224 = vadd.f32 %v223, 0.112945676
    %v225 = vmul.f32 %v207, %v224
    %v226 = vadd.f32 %v225, 0.4994258
    %v227 = vmul.f32 %v207, %v226
    %v228 = vadd.f32 %v227, 1.0
    %v229 = vrcp.pop %v228
    %v230 = vmul.f32 %v228, %v229
    %v231 = vsub.f32 1.0, %v230
    %v232 = vmul.f32 %v229, %v231
    %v233 = vadd.f32 %v229, %v232
    %vm234 = vweird.f32 %v228
    %vm235 = vweird.f32 %v229
    %vm236 = vmor %vm234, %vm235
    %v237 = vsel %vm236, %v229, %v233
    %v238 = vand.u32 2147483647, %v228
    %vm239 = vcmp.eq.f32.partialorder %v238, 8.507059e+37
    %v240 = vand.u32 %v228, 2147483648
    %v241 = vor.u32 1.1754944e-38, %v240
    %v242 = vsel %vm239, %v241, %v237
    %v243 = vmul.f32 %v218, %v242
    %v244 = vmin.f32 %v243, 1.0
    %v245 = vmax.f32 %v244, -1.0
    %v246 = vmul.f32 %v199, %v199
    %v247 = vmin.f32 16.0, %v246
    %v248 = vmul.f32 %v247, 2.1237322e-06
    %v249 = vadd.f32 %v248, 0.00028619796
    %v250 = vmul.f32 %v247, %v249
    %v251 = vadd.f32 %v250, 0.0036580483
    %v252 = vmul.f32 %v247, %v251
    %v253 = vadd.f32 %v252, 0.05243302
    %v254 = vmul.f32 %v247, %v253
    %v255 = vadd.f32 %v254, 0.18741608
    %v256 = vmul.f32 %v247, %v255
    %v257 = vadd.f32 %v256, 1.1283791
    %v258 = vmul.f32 %v199, %v257
    %v259 = vmul.f32 %v247, 3.8918573e-05
    %v260 = vadd.f32 %v259, 0.001143296
    %v261 = vmul.f32 %v247, %v260
    %v262 = vadd.f32 %v261, 0.014752088
    %v263 = vmul.f32 %v247, %v262
    %v264 = vadd.f32 %v263, 0.112945676
    %v265 = vmul.f32 %v247, %v264
    %v266 = vadd.f32 %v265, 0.4994258
    %v267 = vmul.f32 %v247, %v266
    %v268 = vadd.f32 %v267, 1.0
    %v269 = vrcp.pop %v268
    %v270 = vmul.f32 %v268, %v269
    %v271 = vsub.f32 1.0, %v270
    %v272 = vmul.f32 %v269, %v271
    %v273 = vadd.f32 %v269, %v272
    %vm274 = vweird.f32 %v268
    %vm275 = vweird.f32 %v269
    %vm276 = vmor %vm274, %vm275
    %v277 = vsel %vm276, %v269, %v273
    %v278 = vand.u32 2147483647, %v268
    %vm279 = vcmp.eq.f32.partialorder %v278, 8.507059e+37
    %v280 = vand.u32 %v268, 2147483648
    %v281 = vor.u32 1.1754944e-38, %v280
    %v282 = vsel %vm279, %v281, %v277
    %v283 = vmul.f32 %v258, %v282
    %v284 = vmin.f32 %v283, 1.0
    %v285 = vmax.f32 %v284, -1.0
    %v286 = vmul.f32 %v200, %v200
    %v287 = vmin.f32 16.0, %v286
    %v288 = vmul.f32 %v287, 2.1237322e-06
    %v289 = vadd.f32 %v288, 0.00028619796
    %v290 = vmul.f32 %v287, %v289
    %v291 = vadd.f32 %v290, 0.0036580483
    %v292 = vmul.f32 %v287, %v291
    %v293 = vadd.f32 %v292, 0.05243302
    %v294 = vmul.f32 %v287, %v293
    %v295 = vadd.f32 %v294, 0.18741608
    %v296 = vmul.f32 %v287, %v295
    %v297 = vadd.f32 %v296, 1.1283791
    %v298 = vmul.f32 %v200, %v297
    %v299 = vmul.f32 %v287, 3.8918573e-05
    %v300 = vadd.f32 %v299, 0.001143296
    %v301 = vmul.f32 %v287, %v300
    %v302 = vadd.f32 %v301, 0.014752088
    %v303 = vmul.f32 %v287, %v302
    %v304 = vadd.f32 %v303, 0.112945676
    %v305 = vmul.f32 %v287, %v304
    %v306 = vadd.f32 %v305, 0.4994258
    %v307 = vmul.f32 %v287, %v306
    %v308 = vadd.f32 %v307, 1.0
    %v309 = vrcp.pop %v308
    %v310 = vmul.f32 %v308, %v309
    %v311 = vsub.f32 1.0, %v310
    %v312 = vmul.f32 %v309, %v311
    %v313 = vadd.f32 %v309, %v312
    %vm314 = vweird.f32 %v308
    %vm315 = vweird.f32 %v309
    %vm316 = vmor %vm314, %vm315
    %v317 = vsel %vm316, %v309, %v313
    %v318 = vand.u32 2147483647, %v308
    %vm319 = vcmp.eq.f32.partialorder %v318, 8.507059e+37
    %v320 = vand.u32 %v308, 2147483648
    %v321 = vor.u32 1.1754944e-38, %v320
    %v322 = vsel %vm319, %v321, %v317
    %v323 = vmul.f32 %v298, %v322
    %v324 = vmin.f32 %v323, 1.0
    %v325 = vmax.f32 %v324, -1.0
    %v326 = vmul.f32 %v201, %v201
    %v327 = vmin.f32 16.0, %v326
    %v328 = vmul.f32 %v327, 2.1237322e-06
    %v329 = vadd.f32 %v328, 0.00028619796
    %v330 = vmul.f32 %v327, %v329
    %v331 = vadd.f32 %v330, 0.0036580483
    %v332 = vmul.f32 %v327, %v331
    %v333 = vadd.f32 %v332, 0.05243302
    %v334 = vmul.f32 %v327, %v333
    %v335 = vadd.f32 %v334, 0.18741608
    %v336 = vmul.f32 %v327, %v335
    %v337 = vadd.f32 %v336, 1.1283791
    %v338 = vmul.f32 %v201, %v337
    %v339 = vmul.f32 %v327, 3.8918573e-05
    %v340 = vadd.f32 %v339, 0.001143296
    %v341 = vmul.f32 %v327, %v340
    %v342 = vadd.f32 %v341, 0.014752088
    %v343 = vmul.f32 %v327, %v342
    %v344 = vadd.f32 %v343, 0.112945676
    %v345 = vmul.f32 %v327, %v344
    %v346 = vadd.f32 %v345, 0.4994258
    %v347 = vmul.f32 %v327, %v346
    %v348 = vadd.f32 %v347, 1.0
    %v349 = vrcp.pop %v348
    %v350 = vmul.f32 %v348, %v349
    %v351 = vsub.f32 1.0, %v350
    %v352 = vmul.f32 %v349, %v351
    %v353 = vadd.f32 %v349, %v352
    %vm354 = vweird.f32 %v348
    %vm355 = vweird.f32 %v349
    %vm356 = vmor %vm354, %vm355
    %v357 = vsel %vm356, %v349, %v353
    %v358 = vand.u32 2147483647, %v348
    %vm359 = vcmp.eq.f32.partialorder %v358, 8.507059e+37
    %v360 = vand.u32 %v348, 2147483648
    %v361 = vor.u32 1.1754944e-38, %v360
    %v362 = vsel %vm359, %v361, %v357
    %v363 = vmul.f32 %v338, %v362
    %v364 = vmin.f32 %v363, 1.0
    %v365 = vmax.f32 %v364, -1.0
    %v366 = vmul.f32 %v202, %v202
    %v367 = vmin.f32 16.0, %v366
    %v368 = vmul.f32 %v367, 2.1237322e-06
    %v369 = vadd.f32 %v368, 0.00028619796
    %v370 = vmul.f32 %v367, %v369
    %v371 = vadd.f32 %v370, 0.0036580483
    %v372 = vmul.f32 %v367, %v371
    %v373 = vadd.f32 %v372, 0.05243302
    %v374 = vmul.f32 %v367, %v373
    %v375 = vadd.f32 %v374, 0.18741608
    %v376 = vmul.f32 %v367, %v375
    %v377 = vadd.f32 %v376, 1.1283791
    %v378 = vmul.f32 %v202, %v377
    %v379 = vmul.f32 %v367, 3.8918573e-05
    %v380 = vadd.f32 %v379, 0.001143296
    %v381 = vmul.f32 %v367, %v380
    %v382 = vadd.f32 %v381, 0.014752088
    %v383 = vmul.f32 %v367, %v382
    %v384 = vadd.f32 %v383, 0.112945676
    %v385 = vmul.f32 %v367, %v384
    %v386 = vadd.f32 %v385, 0.4994258
    %v387 = vmul.f32 %v367, %v386
    %v388 = vadd.f32 %v387, 1.0
    %v389 = vrcp.pop %v388
    %v390 = vmul.f32 %v388, %v389
    %v391 = vsub.f32 1.0, %v390
    %v392 = vmul.f32 %v389, %v391
    %v393 = vadd.f32 %v389, %v392
    %vm394 = vweird.f32 %v388
    %vm395 = vweird.f32 %v389
    %vm396 = vmor %vm394, %vm395
    %v397 = vsel %vm396, %v389, %v393
    %v398 = vand.u32 2147483647, %v388
    %vm399 = vcmp.eq.f32.partialorder %v398, 8.507059e+37
    %v400 = vand.u32 %v388, 2147483648
    %v401 = vor.u32 1.1754944e-38, %v400
    %v402 = vsel %vm399, %v401, %v397
    %v403 = vmul.f32 %v378, %v402
    %v404 = vmin.f32 %v403, 1.0
    %v405 = vmax.f32 %v404, -1.0
    %v406 = vmul.f32 %v203, %v203
    %v407 = vmin.f32 16.0, %v406
    %v408 = vmul.f32 %v407, 2.1237322e-06
    %v409 = vadd.f32 %v408, 0.00028619796
    %v410 = vmul.f32 %v407, %v409
    %v411 = vadd.f32 %v410, 0.0036580483
    %v412 = vmul.f32 %v407, %v411
    %v413 = vadd.f32 %v412, 0.05243302
    %v414 = vmul.f32 %v407, %v413
    %v415 = vadd.f32 %v414, 0.18741608
    %v416 = vmul.f32 %v407, %v415
    %v417 = vadd.f32 %v416, 1.1283791
    %v418 = vmul.f32 %v203, %v417
    %v419 = vmul.f32 %v407, 3.8918573e-05
    %v420 = vadd.f32 %v419, 0.001143296
    %v421 = vmul.f32 %v407, %v420
    %v422 = vadd.f32 %v421, 0.014752088
    %v423 = vmul.f32 %v407, %v422
    %v424 = vadd.f32 %v423, 0.112945676
    %v425 = vmul.f32 %v407, %v424
    %v426 = vadd.f32 %v425, 0.4994258
    %v427 = vmul.f32 %v407, %v426
    %v428 = vadd.f32 %v427, 1.0
    %v429 = vrcp.pop %v428
    %v430 = vmul.f32 %v428, %v429
    %v431 = vsub.f32 1.0, %v430
    %v432 = vmul.f32 %v429, %v431
    %v433 = vadd.f32 %v429, %v432
    %vm434 = vweird.f32 %v428
    %vm435 = vweird.f32 %v429
    %vm436 = vmor %vm434, %vm435
    %v437 = vsel %vm436, %v429, %v433
    %v438 = vand.u32 2147483647, %v428
    %vm439 = vcmp.eq.f32.partialorder %v438, 8.507059e+37
    %v440 = vand.u32 %v428, 2147483648
    %v441 = vor.u32 1.1754944e-38, %v440
    %v442 = vsel %vm439, %v441, %v437
    %v443 = vmul.f32 %v418, %v442
    %v444 = vmin.f32 %v443, 1.0
    %v445 = vmax.f32 %v444, -1.0
    %v446 = vmul.f32 %v204, %v204
    %v447 = vmin.f32 16.0, %v446
    %v448 = vmul.f32 %v447, 2.1237322e-06
    %v449 = vadd.f32 %v448, 0.00028619796
    %v450 = vmul.f32 %v447, %v449
    %v451 = vadd.f32 %v450, 0.0036580483
    %v452 = vmul.f32 %v447, %v451
    %v453 = vadd.f32 %v452, 0.05243302
    %v454 = vmul.f32 %v447, %v453
    %v455 = vadd.f32 %v454, 0.18741608
    %v456 = vmul.f32 %v447, %v455
    %v457 = vadd.f32 %v456, 1.1283791
    %v458 = vmul.f32 %v204, %v457
    %v459 = vmul.f32 %v447, 3.8918573e-05
    %v460 = vadd.f32 %v459, 0.001143296
    %v461 = vmul.f32 %v447, %v460
    %v462 = vadd.f32 %v461, 0.014752088
    %v463 = vmul.f32 %v447, %v462
    %v464 = vadd.f32 %v463, 0.112945676
    %v465 = vmul.f32 %v447, %v464
    %v466 = vadd.f32 %v465, 0.4994258
    %v467 = vmul.f32 %v447, %v466
    %v468 = vadd.f32 %v467, 1.0
    %v469 = vrcp.pop %v468
    %v470 = vmul.f32 %v468, %v469
    %v471 = vsub.f32 1.0, %v470
    %v472 = vmul.f32 %v469, %v471
    %v473 = vadd.f32 %v469, %v472
    %vm474 = vweird.f32 %v468
    %vm475 = vweird.f32 %v469
    %vm476 = vmor %vm474, %vm475
    %v477 = vsel %vm476, %v469, %v473
    %v478 = vand.u32 2147483647, %v468
    %vm479 = vcmp.eq.f32.partialorder %v478, 8.507059e+37
    %v480 = vand.u32 %v468, 2147483648
    %v481 = vor.u32 1.1754944e-38, %v480
    %v482 = vsel %vm479, %v481, %v477
    %v483 = vmul.f32 %v458, %v482
    %v484 = vmin.f32 %v483, 1.0
    %v485 = vmax.f32 %v484, -1.0
    %v486 = vmul.f32 %v205, %v205
    %v487 = vmin.f32 16.0, %v486
    %v488 = vmul.f32 %v487, 2.1237322e-06
    %v489 = vadd.f32 %v488, 0.00028619796
    %v490 = vmul.f32 %v487, %v489
    %v491 = vadd.f32 %v490, 0.0036580483
    %v492 = vmul.f32 %v487, %v491
    %v493 = vadd.f32 %v492, 0.05243302
    %v494 = vmul.f32 %v487, %v493
    %v495 = vadd.f32 %v494, 0.18741608
    %v496 = vmul.f32 %v487, %v495
    %v497 = vadd.f32 %v496, 1.1283791
    %v498 = vmul.f32 %v205, %v497
    %v499 = vmul.f32 %v487, 3.8918573e-05
    %v500 = vadd.f32 %v499, 0.001143296
    %v501 = vmul.f32 %v487, %v500
    %v502 = vadd.f32 %v501, 0.014752088
    %v503 = vmul.f32 %v487, %v502
    %v504 = vadd.f32 %v503, 0.112945676
    %v505 = vmul.f32 %v487, %v504
    %v506 = vadd.f32 %v505, 0.4994258
    %v507 = vmul.f32 %v487, %v506
    %v508 = vadd.f32 %v507, 1.0
    %v509 = vrcp.pop %v508
    %v510 = vmul.f32 %v508, %v509
    %v511 = vsub.f32 1.0, %v510
    %v512 = vmul.f32 %v509, %v511
    %v513 = vadd.f32 %v509, %v512
    %vm514 = vweird.f32 %v508
    %vm515 = vweird.f32 %v509
    %vm516 = vmor %vm514, %vm515
    %v517 = vsel %vm516, %v509, %v513
    %v518 = vand.u32 2147483647, %v508
    %vm519 = vcmp.eq.f32.partialorder %v518, 8.507059e+37
    %v520 = vand.u32 %v508, 2147483648
    %v521 = vor.u32 1.1754944e-38, %v520
    %v522 = vsel %vm519, %v521, %v517
    %v523 = vmul.f32 %v498, %v522
    %v524 = vmin.f32 %v523, 1.0
    %v525 = vmax.f32 %v524, -1.0
    %v526 = vadd.f32 %v245, 1.0
    %v527 = vadd.f32 %v285, 1.0
    %v528 = vadd.f32 %v325, 1.0
    %v529 = vadd.f32 %v365, 1.0
    %v530 = vadd.f32 %v405, 1.0
    %v531 = vadd.f32 %v445, 1.0
    %v532 = vadd.f32 %v485, 1.0
    %v533 = vadd.f32 %v525, 1.0
    %v534 = vmul.f32 %v190, %v526
    %v535 = vmul.f32 %v191, %v527
    %v536 = vmul.f32 %v192, %v528
    %v537 = vmul.f32 %v193, %v529
    %v538 = vmul.f32 %v194, %v530
    %v539 = vmul.f32 %v195, %v531
    %v540 = vmul.f32 %v196, %v532
    %v541 = vmul.f32 %v197, %v533
    %v542 = vld [vmem:[#allocation2] sm:$0xff]
    %v543 = vld [vmem:[#allocation2 + $0x8] sm:$0xff]
    %v544 = vld [vmem:[#allocation2 + $0x10] sm:$0xff]
    %v545 = vld [vmem:[#allocation2 + $0x18] sm:$0xff]
    %v546 = vld [vmem:[#allocation8] sm:$0xff]
    %v547 = vld [vmem:[#allocation8 + $0x8] sm:$0xff]
    %v548 = vld [vmem:[#allocation8 + $0x10] sm:$0xff]
    %v549 = vld [vmem:[#allocation8 + $0x18] sm:$0xff]
    %v550 = vld [vmem:[#allocation8 + $0x20] sm:$0xff]
    %v551 = vld [vmem:[#allocation8 + $0x28] sm:$0xff]
    %v552 = vld [vmem:[#allocation8 + $0x30] sm:$0xff]
    %v553 = vld [vmem:[#allocation8 + $0x38] sm:$0xff]
    %v554 = vld [vmem:[#allocation8 + $0x40] sm:$0xff]
    %v555 = vld [vmem:[#allocation8 + $0x48] sm:$0xff]
    %v556 = vld [vmem:[#allocation8 + $0x50] sm:$0xff]
    %v557 = vld [vmem:[#allocation8 + $0x58] sm:$0xff]
    %v558 = vld [vmem:[#allocation8 + $0x60] sm:$0xff]
    %v559 = vld [vmem:[#allocation8 + $0x68] sm:$0xff]
    %v560 = vld [vmem:[#allocation8 + $0x70] sm:$0xff]
    %v561 = vld [vmem:[#allocation8 + $0x78] sm:$0xff]
    %v562 = vld [vmem:[#allocation8 + $0x80] sm:$0xff]
    %v563 = vld [vmem:[#allocation8 + $0x88] sm:$0xff]
    %v564 = vld [vmem:[#allocation8 + $0x90] sm:$0xff]
    %v565 = vld [vmem:[#allocation8 + $0x98] sm:$0xff]
    %v566 = vld [vmem:[#allocation8 + $0xa0] sm:$0xff]
    %v567 = vld [vmem:[#allocation8 + $0xa8] sm:$0xff]
    %v568 = vld [vmem:[#allocation8 + $0xb0] sm:$0xff]
    %v569 = vld [vmem:[#allocation8 + $0xb8] sm:$0xff]
    %v570 = vld [vmem:[#allocation8 + $0xc0] sm:$0xff]
    %v571 = vld [vmem:[#allocation8 + $0xc8] sm:$0xff]
    %v572 = vld [vmem:[#allocation8 + $0xd0] sm:$0xff]
    %v573 = vld [vmem:[#allocation8 + $0xd8] sm:$0xff]
    %v574 = vld [vmem:[#allocation8 + $0xe0] sm:$0xff]
    %v575 = vld [vmem:[#allocation8 + $0xe8] sm:$0xff]
    %v576 = vld [vmem:[#allocation8 + $0xf0] sm:$0xff]
    %v577 = vld [vmem:[#allocation8 + $0xf8] sm:$0xff]
    %578 = vmatpush.msra.mxu0 %v561
    %579 = vmatpush.msra.mxu0 %v560
    %580 = vmatpush.msra.mxu0 %v559
    %581 = vmatpush.msra.mxu0 %v558
    %582 = vmatpush.msra.mxu0 %v557
    %583 = vmatpush.msra.mxu0 %v556
    %584 = vmatpush.msra.mxu0 %v555
    %585 = vmatpush.msra.mxu0 %v554
    %586 = vmatpush.msra.mxu0 %v553
    %587 = vmatpush.msra.mxu0 %v552
    %588 = vmatpush.msra.mxu0 %v551
    %589 = vmatpush.msra.mxu0 %v550
    %590 = vmatpush.msra.mxu0 %v549
    %591 = vmatpush.msra.mxu0 %v548
    %592 = vmatpush.msra.mxu0 %v547
    %593 = vmatpush.msra.mxu0 %v546
    %594 = vmatmul.f32.gmra.mxu0 %v534
    %v595 = vpop.f32.mrf.mxu0
    %v596 = vadd.f32 0.0, %v595
    %597 = vmatmul.f32.gmra.mxu0 %v536
    %v598 = vpop.f32.mrf.mxu0
    %v599 = vadd.f32 0.0, %v598
    %600 = vmatmul.f32.gmra.mxu0 %v538
    %v601 = vpop.f32.mrf.mxu0
    %v602 = vadd.f32 0.0, %v601
    %603 = vmatmul.f32.gmra.mxu0 %v540
    %v604 = vpop.f32.mrf.mxu0
    %v605 = vadd.f32 0.0, %v604
    %606 = vdwg.mxu0
    %607 = vmatpush.msra.mxu0 %v577
    %608 = vmatpush.msra.mxu0 %v576
    %609 = vmatpush.msra.mxu0 %v575
    %610 = vmatpush.msra.mxu0 %v574
    %611 = vmatpush.msra.mxu0 %v573
    %612 = vmatpush.msra.mxu0 %v572
    %613 = vmatpush.msra.mxu0 %v571
    %614 = vmatpush.msra.mxu0 %v570
    %615 = vmatpush.msra.mxu0 %v569
    %616 = vmatpush.msra.mxu0 %v568
    %617 = vmatpush.msra.mxu0 %v567
    %618 = vmatpush.msra.mxu0 %v566
    %619 = vmatpush.msra.mxu0 %v565
    %620 = vmatpush.msra.mxu0 %v564
    %621 = vmatpush.msra.mxu0 %v563
    %622 = vmatpush.msra.mxu0 %v562
    %623 = vmatmul.f32.gmra.mxu0 %v535
    %v624 = vpop.f32.mrf.mxu0
    %v625 = vadd.f32 %v596, %v624
    %626 = vmatmul.f32.gmra.mxu0 %v537
    %v627 = vpop.f32.mrf.mxu0
    %v628 = vadd.f32 %v599, %v627
    %629 = vmatmul.f32.gmra.mxu0 %v539
    %v630 = vpop.f32.mrf.mxu0
    %v631 = vadd.f32 %v602, %v630
    %632 = vmatmul.f32.gmra.mxu0 %v541
    %v633 = vpop.f32.mrf.mxu0
    %v634 = vadd.f32 %v605, %v633
    %635 = vdwg.mxu0
    %v636 = vadd.f32 %v542, %v625
    %v637 = vadd.f32 %v543, %v628
    %v638 = vadd.f32 %v544, %v631
    %v639 = vadd.f32 %v545, %v634
    %640 = vst [vmem:[#allocation2] sm:$0xff] %v636
    %641 = vst [vmem:[#allocation2 + $0x8] sm:$0xff] %v637
    %642 = vst [vmem:[#allocation2 + $0x10] sm:$0xff] %v638
    %643 = vst [vmem:[#allocation2 + $0x18] sm:$0xff] %v639
    // Predicated region
    $region42: #{_lambda_.1} parent=1 // pred_check
      %p644 = pneg %p82
    $region43: #{_lambda_.1} parent=1 // pred_check_branch
      %646 = sbr.rel (%p644) target = $region45
    $region44: #{_lambda_.1} parent=1 // pred_region
      %v647 = vld [vmem:[#allocation2] sm:$0xff]
      %v648 = vld [vmem:[#allocation2 + $0x8] sm:$0xff]
      %v649 = vld [vmem:[#allocation2 + $0x10] sm:$0xff]
      %v650 = vld [vmem:[#allocation2 + $0x18] sm:$0xff]
      %v651 = vld [vmem:[#allocation9] sm:$0x1]
      %v653 = vperm.slane %v651, 0
      %v655 = vadd.f32 %v647, %v653
      %v656 = vadd.f32 %v648, %v653
      %v657 = vadd.f32 %v649, %v653
      %v658 = vadd.f32 %v650, %v653
      %659 = vst [vmem:[#allocation11] sm:$0xff] %v655
      %660 = vst [vmem:[#allocation11 + $0x8] sm:$0xff] %v656
      %661 = vst [vmem:[#allocation11 + $0x10] sm:$0xff] %v657
      %662 = vst [vmem:[#allocation11 + $0x18] sm:$0xff] %v658
    $region45: #{_lambda_.1} parent=1 // pred_fallthru
      _
    // Predicated region
    $region46: #{_lambda_.1} parent=1 // pred_check
      _
    $region47: #{_lambda_.1} parent=1 // pred_check_branch
      %664 = sbr.rel (0) target = $region49
    $region48: #{_lambda_.1} parent=1 // pred_region
      %666 = vsyncadd [#allocation5], 0
      %s667 = sshll.u32 [#allocation11], 4
      %s668 = int_to_ptr.vmem [resolvable:$true] %s667
      %s669 = sshll.u32 %s5, 4
      %s670 = int_to_ptr.hbm [resolvable:$true] %s669
      %675 = dma.vmem_to_hbm [thread:$0]  %s668, 512, %s670, [#allocation5], 128, 128, 8
    $region49: #{_lambda_.1} parent=1 // pred_fallthru
      _
    // Predicated region
    $region50: #{_lambda_.1} parent=1 // pred_check
      _
    $region51: #{_lambda_.1} parent=1 // pred_check_branch
      %677 = sbr.rel (0) target = $region53
    $region52: #{_lambda_.1} parent=1 // pred_region
      %679 = dma.done [#allocation5], 512
    $region53: #{_lambda_.1} parent=1 // pred_fallthru
      _
    %680 = vsyncpa [#allocation4], 1
    %681 = vsyncpa [#allocation7], 1
    %682 = vsyncpa [#allocation10], 1
    %683 = vsyncpa [#allocation5], 1

</llo_original>
